<compile_context>
chip_gen: v5e
topology: v5e:2x2
jax: 0.10.0
libtpu: 0.0.40
codegen_flags: <defaults>
</compile_context>

<pallas_src>
import functools

import jax
import jax.numpy as jnp
from jax.experimental import pallas as pl
from jax.experimental.pallas import tpu as pltpu

_LANE_WIDTH = 1024        # lane-dense last dim (large multiple of 128 -> unmasked vst)
_MAX_BLOCK_ROWS = 1024    # 1024 x 1024 f32 = 4 MiB/block; ~24 MiB double-buffered
_TARGET_BLOCKS = 4        # aim for >=4 blocks so v7x's 2 TCs both get work
_VMEM_LIMIT_BYTES = 40 * 1024 * 1024   # above v5e's 16 MiB scoped default,
                                       # below v7x's 64 MiB physical VMEM per TC


def _round_up(n, m):
    return ((n + m - 1) // m) * m


def _make_focal_kernel(gamma, alpha):
    """Specialize the kernel on (gamma, alpha); both are Python constants."""
    # Fuse the leading -1 of the loss into the 2-entry alpha table.
    neg_a0 = float(-alpha)            # target == 0
    neg_a1 = float(-(1.0 - alpha))    # target == 1
    gamma_f = float(gamma)
    int_gamma = int(gamma_f) if (gamma_f.is_integer() and gamma_f >= 0) else None

    def kernel(x_ref, t_ref, o_ref):
        # f32 math regardless of input dtype; cast only at the final store.
        x = x_ref[...].astype(jnp.float32)
        t = t_ref[...].astype(jnp.float32)          # native int target -> f32 {0.,1.}

        pt = jnp.exp(x)                             # EUP transcendental
        omp = 1.0 - pt
        if int_gamma is None:
            w = omp ** gamma_f                      # same semantics as reference pow
        elif int_gamma == 0:
            w = jnp.ones_like(omp)
        else:                                       # gamma = 2 default -> one square
            w = omp
            for _ in range(int_gamma - 1):
                w = w * omp

        # neg_at == -alpha_vec[target] with the -1 sign folded in (binary target).
        neg_at = neg_a0 + t * (neg_a1 - neg_a0)
        o_ref[...] = (w * x * neg_at).astype(o_ref.dtype)

    return kernel


@functools.partial(jax.jit, static_argnames=("gamma", "alpha", "out_dtype"))
def focal_loss(x, target, gamma=2, alpha=0.25, out_dtype=None):
    """Elementwise focal loss; same shape as `x`, dtype `out_dtype` (default x.dtype)."""
    assert x.shape == target.shape, (x.shape, target.shape)
    orig_shape = x.shape
    out_dtype = x.dtype if out_dtype is None else out_dtype

    total = int(x.size)
    cols = _LANE_WIDTH
    rows = pl.cdiv(total, cols)
    padded = rows * cols

    # Row tile: prefer >= _TARGET_BLOCKS blocks (megacore sharding on v7x), capped
    # at _MAX_BLOCK_ROWS; tiny inputs fall back to a single full-extent block.
    tm = min(_MAX_BLOCK_ROWS, _round_up(pl.cdiv(rows, _TARGET_BLOCKS), 8))
    if tm >= rows:
        tm = rows                      # full row extent -> always a legal block shape
    num_blocks = pl.cdiv(rows, tm)     # ragged last block handled by Pallas

    # Lane-dense flattening + (<=1023-elem) tail pad for the reshape only.
    # Pad value 0 is harmless: the padded tail lies past `total` and is sliced off.
    xf = x.reshape(-1)
    tf = target.reshape(-1)            # native dtype straight into the kernel
    if padded != total:
        xf = jnp.pad(xf, (0, padded - total))
        tf = jnp.pad(tf, (0, padded - total))
    x2 = xf.reshape(rows, cols)
    t2 = tf.reshape(rows, cols)

    kernel = _make_focal_kernel(gamma, alpha)

    out = pl.pallas_call(
        kernel,
        out_shape=jax.ShapeDtypeStruct((rows, cols), out_dtype),
        grid=(num_blocks,),
        in_specs=[
            pl.BlockSpec((tm, cols), lambda i: (i, 0)),   # logpt (x)
            pl.BlockSpec((tm, cols), lambda i: (i, 0)),   # target (native dtype)
        ],
        out_specs=pl.BlockSpec((tm, cols), lambda i: (i, 0)),
        compiler_params=pltpu.CompilerParams(
            dimension_semantics=("parallel",),            # megacore-shardable grid
            vmem_limit_bytes=_VMEM_LIMIT_BYTES,
        ),
    )(x2, t2)

    return out.reshape(-1)[:total].reshape(orig_shape)


def focal_loss_ref(x, target, gamma=2, alpha=0.25):
    """Pure-JAX reference of the PyTorch forward (float-alpha path)."""
    alpha_vec = jnp.array([alpha, 1.0 - alpha], dtype=x.dtype)
    pt = jnp.exp(x)
    at = alpha_vec[target]
    logpt = x * at
    return -1.0 * (1.0 - pt) ** gamma * logpt


if __name__ == "__main__":
    key = jax.random.PRNGKey(0)
    kx, kt = jax.random.split(key)

    B, C, H, W = 2, 4, 16, 16
    # "input" is a log-probability-like tensor (<= 0), target is 0/1 class ids.
    x = -jnp.abs(jax.random.normal(kx, (B, C, H, W), dtype=jnp.float32))
    target = jax.random.bernoulli(kt, 0.5, (B, C, H, W)).astype(jnp.int32)

    loss = jax.block_until_ready(focal_loss(x, target))
    ref = focal_loss_ref(x, target)
    assert loss.shape == x.shape and loss.dtype == x.dtype
    assert jnp.allclose(loss, ref, atol=1e-5, rtol=1e-5)

    # Ragged-grid / reshape-pad path: rows not divisible by the row tile.
    kx2, kt2 = jax.random.split(jax.random.PRNGKey(1))
    x_big = -jnp.abs(jax.random.normal(kx2, (3, 5, 23, 29), dtype=jnp.float32))
    t_big = jax.random.bernoulli(kt2, 0.5, x_big.shape).astype(jnp.int32)
    loss_big = jax.block_until_ready(focal_loss(x_big, t_big))
    assert jnp.allclose(loss_big, focal_loss_ref(x_big, t_big), atol=1e-5, rtol=1e-5)

    # Opt-in bf16 output (f32 internal math, cast only at the final store).
    loss_bf16 = jax.block_until_ready(focal_loss(x, target, out_dtype=jnp.bfloat16))
    assert loss_bf16.dtype == jnp.bfloat16
    assert jnp.allclose(loss_bf16.astype(jnp.float32), ref, atol=2e-2, rtol=2e-2)

    print("KERNEL_OK")
</pallas_src>

<mosaic_0001>
module attributes {stable_mosaic.version = 11 : i64} {
  func.func @kernel(%arg0: i32, %arg1: memref<2x1024xf32, #tpu.memory_space<vmem>>, %arg2: memref<2x1024xi32, #tpu.memory_space<vmem>>, %arg3: memref<2x1024xf32, #tpu.memory_space<vmem>>) attributes {dimension_semantics = [#tpu.dimension_semantics<parallel>], iteration_bounds = array<i64: 1>, scalar_prefetch = 0 : i64, scratch_operands = 0 : i64, tpu.core_type = #tpu.core_type<tc>, window_params = [{transform_indices = @transform_0, window_bounds = array<i64: 2, 1024>}, {transform_indices = @transform_1, window_bounds = array<i64: 2, 1024>}, {transform_indices = @transform_2, window_bounds = array<i64: 2, 1024>}]} {
    %c0 = arith.constant 0 : index
    %c0_0 = arith.constant 0 : index
    %0 = vector.load %arg1[%c0, %c0_0] : memref<2x1024xf32, #tpu.memory_space<vmem>>, vector<2x1024xf32>
    %c0_1 = arith.constant 0 : index
    %c0_2 = arith.constant 0 : index
    %1 = vector.load %arg2[%c0_1, %c0_2] : memref<2x1024xi32, #tpu.memory_space<vmem>>, vector<2x1024xi32>
    %2 = arith.sitofp %1 : vector<2x1024xi32> to vector<2x1024xf32>
    %3 = math.exp %0 : vector<2x1024xf32>
    %cst = arith.constant 1.000000e+00 : f32
    %4 = vector.broadcast %cst : f32 to vector<2x1024xf32>
    %5 = arith.subf %4, %3 : vector<2x1024xf32>
    %6 = arith.mulf %5, %5 : vector<2x1024xf32>
    %cst_3 = arith.constant -5.000000e-01 : f32
    %7 = vector.broadcast %cst_3 : f32 to vector<2x1024xf32>
    %8 = arith.mulf %2, %7 : vector<2x1024xf32>
    %cst_4 = arith.constant -2.500000e-01 : f32
    %9 = vector.broadcast %cst_4 : f32 to vector<2x1024xf32>
    %10 = arith.addf %9, %8 : vector<2x1024xf32>
    %11 = arith.mulf %6, %0 : vector<2x1024xf32>
    %12 = arith.mulf %11, %10 : vector<2x1024xf32>
    %c0_5 = arith.constant 0 : index
    %c0_6 = arith.constant 0 : index
    %13 = vector.load %arg3[%c0_5, %c0_6] : memref<2x1024xf32, #tpu.memory_space<vmem>>, vector<2x1024xf32>
    tpu.vector_store %arg3[%c0_5, %c0_6], %12 {strides = array<i32>} : memref<2x1024xf32, #tpu.memory_space<vmem>>, vector<2x1024xf32>,
    return
  }
  func.func @transform_0(%arg0: i32) -> (i32, i32) {
    %c0_i32 = arith.constant 0 : i32
    %c0_i32_0 = arith.constant 0 : i32
    return %arg0, %c0_i32 : i32, i32
  }
  func.func @transform_1(%arg0: i32) -> (i32, i32) {
    %c0_i32 = arith.constant 0 : i32
    %c0_i32_0 = arith.constant 0 : i32
    return %arg0, %c0_i32 : i32, i32
  }
  func.func @transform_2(%arg0: i32) -> (i32, i32) {
    %c0_i32 = arith.constant 0 : i32
    %c0_i32_0 = arith.constant 0 : i32
    return %arg0, %c0_i32 : i32, i32
  }
}

</mosaic_0001>

<llo_original>
// kernel: focal_loss.1
$region0: #{focal_loss.1}
  #allocation0 [shape = 'u32[]', space=smem, size = 0x4, offset = 0x4, fixed_abs, tag = 'smem constant byte address 0x4 - core index']
  #allocation1 [shape = 'u32[72,128]{1,0:T(1,128)}', space=vmem, size = 0x9000, scoped, tag = 'internal scratch']
  %s0 = inlined_call_operand.vmem [shape: f32[2,1024], index: 0, kind: input, shape index: {}]
  %s1 = inlined_call_operand.vmem [shape: s32[2,1024], index: 1, kind: input, shape index: {}]
  %s2 = inlined_call_operand.vmem [shape: f32[2,1024], index: 2, kind: output, shape index: {}]
  %s3 = sld [smem:[#allocation0]]
  $region18: #{focal_loss.1} parent=0
    _
  %s5 = ssub.s32 1, %s3
  %s6 = scalar_select 0, %s5, %s3
  // Predicated region
  $region2: #{focal_loss.1} parent=0 // pred_check
    _
  $region3: #{focal_loss.1} parent=0 // pred_check_branch
    %8 = sbr.rel (0) target = $region5
  $region4: #{focal_loss.1} parent=0 // pred_region
    _
  $region5: #{focal_loss.1} parent=0 // pred_fallthru
    _
  // Predicated region
  $region6: #{focal_loss.1} parent=0 // pred_check
    _
  $region7: #{focal_loss.1} parent=0 // pred_check_branch
    %10 = sbr.rel (0) target = $region9
  $region8: #{focal_loss.1} parent=0 // pred_region
    _
  $region9: #{focal_loss.1} parent=0 // pred_fallthru
    _
  %v11 = vld [vmem:[%s0] sm:$0xff]
  %v12 = vld [vmem:[%s0 + $0x8] sm:$0xff]
  %v13 = vld [vmem:[%s1] sm:$0xff]
  %v14 = vld [vmem:[%s1 + $0x8] sm:$0xff]
  %v15 = vcvt.s32.f32 %v13
  %v16 = vcvt.s32.f32 %v14
  %v17 = vmul.f32 %v11, 1.442695
  %v18 = vpow.pop %v17
  %v19 = vmul.f32 %v12, 1.442695
  %v20 = vpow.pop %v19
  %v21 = vsub.f32 1.0, %v18
  %v22 = vsub.f32 1.0, %v20
  %v23 = vmul.f32 %v21, %v21
  %v24 = vmul.f32 %v22, %v22
  %v25 = vmul.f32 %v15, -0.5
  %v26 = vmul.f32 %v16, -0.5
  %v27 = vadd.f32 %v25, -0.25
  %v28 = vadd.f32 %v26, -0.25
  %v29 = vmul.f32 %v23, %v11
  %v30 = vmul.f32 %v24, %v12
  %v31 = vmul.f32 %v29, %v27
  %v32 = vmul.f32 %v30, %v28
  %33 = vst [vmem:[%s2] sm:$0xff] %v31
  %34 = vst [vmem:[%s2 + $0x8] sm:$0xff] %v32
  // Predicated region
  $region10: #{focal_loss.1} parent=0 // pred_check
    _
  $region11: #{focal_loss.1} parent=0 // pred_check_branch
    %36 = sbr.rel (0) target = $region13
  $region12: #{focal_loss.1} parent=0 // pred_region
    _
  $region13: #{focal_loss.1} parent=0 // pred_fallthru
    _
  // Predicated region
  $region14: #{focal_loss.1} parent=0 // pred_check
    _
  $region15: #{focal_loss.1} parent=0 // pred_check_branch
    %38 = sbr.rel (0) target = $region17
  $region16: #{focal_loss.1} parent=0 // pred_region
    _
  $region17: #{focal_loss.1} parent=0 // pred_fallthru
    _

</llo_original>
